<compile_context>
chip_gen: v7x
topology: tpu7x:2x2x1
jax: 0.10.0
libtpu: 0.0.40
codegen_flags: <defaults>
</compile_context>

<pallas_src>
import functools

import jax
import jax.numpy as jnp
from jax.experimental import pallas as pl
from jax.experimental.pallas import tpu as pltpu


def _round_up(x, m):
    return ((x + m - 1) // m) * m


def _round_down(x, m):
    return (x // m) * m


def _tpu_generation():
    """Best-effort (physical VMEM bytes per core, is_pre_v6) from the local device."""
    kind = ""
    try:
        kind = jax.devices()[0].device_kind.lower()
    except Exception:
        pass
    if ("v7" in kind) or ("7x" in kind):
        vmem_phys = 64 * 1024 * 1024          # v7x: 64 MiB per TensorCore
        pre_v6 = False
    elif "v6" in kind:
        vmem_phys = 128 * 1024 * 1024         # v6e: 128 MiB
        pre_v6 = False
    elif kind:                                 # v5e/v5p/v4/...: 128 MiB, no bf16 VALU
        vmem_phys = 128 * 1024 * 1024
        pre_v6 = True
    else:                                      # unknown: conservative
        vmem_phys = 64 * 1024 * 1024
        pre_v6 = True
    # If the Pallas hardware query is available, never budget above what it reports.
    try:
        vmem_phys = min(vmem_phys, int(pltpu.get_tpu_info().vmem_capacity_bytes))
    except Exception:
        pass
    return vmem_phys, pre_v6


def sse_kernel(x_ref, w_ref, b_ref, o_ref, *, unroll_channels, gate_in_act_dtype):
    # x_ref: (C, TS)  channel-major tile, spatial positions in the lane dim
    # w_ref: (C, C)   conv weight (C_out, C_in); f32 for the VPU path, act dtype for MXU
    # b_ref: (C, 1)   conv bias in f32
    # o_ref: (C, TS)  output tile (same dtype as x)
    x = x_ref[...]
    C, TS = x.shape
    b = b_ref[...]                                    # (C, 1) f32, broadcasts over lanes

    if unroll_channels:
        # Tiny channel count: the MXU would be ~97% padding, so do an unrolled VPU
        # weighted sum over channels instead (spatial stays lane-dense).  Weight arrives
        # already in f32 from the wrapper -> the astype below is a no-op (no per-step
        # dtype round-trip, no bf16 weight precision loss).
        xf = x.astype(jnp.float32)
        wf = w_ref[...].astype(jnp.float32)           # (C, C), already f32
        acc = jnp.zeros((C, TS), jnp.float32)
        for c in range(C):                            # static unroll, C <= 8
            acc = acc + wf[:, c:c + 1] * xf[c:c + 1, :]
        s = acc + b
    else:
        # Larger C: contract the channel dim on the MXU with f32 accumulation.
        s = jnp.dot(w_ref[...], x, preferred_element_type=jnp.float32) + b

    # Exact f32 sigmoid (exp on the EUP).  pl.reciprocal(approx=True) would only matter
    # if VALU-bound at tiny tiles; at these tile sizes the kernel is HBM-bound.
    gate = jax.nn.sigmoid(s)

    if gate_in_act_dtype:
        # bf16 on v6e/v7x: native bf16 VPU multiply after a single gate downcast.
        o_ref[...] = x * gate.astype(x.dtype)
    else:
        # f32 inputs, or bf16 on pre-v6 chips (no bf16 VALU): multiply in f32, one downcast.
        o_ref[...] = (x.astype(jnp.float32) * gate).astype(o_ref.dtype)


def sse_forward(x_nchw, weight, bias, *, ts=None, vmem_budget_bytes=None):
    """y = x * sigmoid(conv1x1(x)).

    x_nchw: (N, C, H, W); weight: (C_out, C_in) squeezed 1x1-conv weight; bias: (C_out,).
    """
    N, C, H, W = x_nchw.shape
    HW = H * W
    dtype = x_nchw.dtype
    itemsize = jnp.dtype(dtype).itemsize

    vmem_phys, pre_v6 = _tpu_generation()
    if vmem_budget_bytes is None:
        # ~half of physical VMEM for this kernel's buffers:
        #   v7x: ~32 MiB of 64 MiB/TC, v5e/v6e: ~64 MiB of 128 MiB.
        vmem_budget_bytes = max(24 * 1024 * 1024, vmem_phys // 2)

    small_c = C <= 8

    # Free reshape (collapses the two minor dims, no transpose / no extra HBM pass).
    x3 = x_nchw.reshape(N, C, HW)

    # Weight dtype: f32 for the small-C VPU path (tight numerics, no per-step cast);
    # activation dtype for the MXU path (bf16 x bf16 -> f32 accumulate is native).
    w = weight.astype(jnp.float32) if small_c else weight.astype(dtype)
    b = bias.reshape(C, 1).astype(jnp.float32)

    w_item = jnp.dtype(w.dtype).itemsize
    sub = max(8, 32 // itemsize)                       # sublane pack: 8 f32 / 16 bf16 / 32 i8
    c_pad = _round_up(C, sub)
    per_col_bytes = c_pad * itemsize                   # padded bytes per spatial column

    # Resident parameter footprint (padded VMEM tiles).
    w_tile_bytes = _round_up(C, max(8, 32 // w_item)) * _round_up(C, 128) * w_item
    b_tile_bytes = _round_up(C, 8) * 128 * 4
    # Single-buffer the weight once it is large enough to matter (constant index_map,
    # so it is only ever DMA'd once; double-buffering it just wastes VMEM at big C).
    single_buf_w = w_tile_bytes >= (1 << 20)
    w_bufs = 1 if single_buf_w else 2
    fixed_bytes = w_bufs * w_tile_bytes + 2 * b_tile_bytes

    if ts is None:
        avail = max(vmem_budget_bytes - fixed_bytes, 4 * c_pad * 128 * itemsize)
        # in + out tiles, each double-buffered -> 4 tiles of (c_pad, ts).
        max_ts = max(128, _round_down(avail // (4 * per_col_bytes), 128))
        if HW <= max_ts:
            ts = HW                                    # one lane-dense tile per image
        else:
            # Target ~4 MiB per buffer: per-step DMA time >> ~0.35 us grid-step overhead
            # on every generation (incl. v7x's 3.2 TB/s HBM) -> stays HBM-bound.
            target_tile_bytes = 4 * 1024 * 1024
            ts_target = max(128, _round_down(target_tile_bytes // per_col_bytes, 128))
            ts = min(max_ts, ts_target)

    grid = (N, pl.cdiv(HW, ts))                        # tail handled by Pallas OOB masking

    # Declare the actual footprint to Mosaic: the default scoped VMEM limit (16 MiB on
    # v5e, 32 MiB on v6e/v7x) would otherwise reject / shrink the big-tile path.
    ts_pad = _round_up(min(ts, HW), 128)
    footprint = 4 * c_pad * ts_pad * itemsize + fixed_bytes
    vmem_limit = int(min(vmem_phys - 16 * 1024 * 1024,
                         max(footprint + footprint // 4 + 4 * 1024 * 1024,
                             32 * 1024 * 1024)))

    if single_buf_w:
        w_spec = pl.BlockSpec((C, C), lambda n, s: (0, 0), pipeline_mode=pl.Buffered(1))
    else:
        w_spec = pl.BlockSpec((C, C), lambda n, s: (0, 0))

    kernel = functools.partial(
        sse_kernel,
        unroll_channels=small_c,
        gate_in_act_dtype=(jnp.dtype(dtype) == jnp.dtype(jnp.bfloat16)) and not pre_v6,
    )

    out3 = pl.pallas_call(
        kernel,
        out_shape=jax.ShapeDtypeStruct((N, C, HW), dtype),
        grid_spec=pltpu.PrefetchScalarGridSpec(
            num_scalar_prefetch=0,
            grid=grid,
            in_specs=[
                pl.BlockSpec((None, C, ts), lambda n, s: (n, 0, s)),   # x tile (C, ts)
                w_spec,                                                # weight (resident)
                pl.BlockSpec((C, 1), lambda n, s: (0, 0)),             # bias (resident)
            ],
            out_specs=pl.BlockSpec((None, C, ts), lambda n, s: (n, 0, s)),
        ),
        compiler_params=pltpu.CompilerParams(
            # Both axes independent -> megacore / 2-TC sharding on v7x.
            dimension_semantics=("parallel", "parallel"),
            vmem_limit_bytes=vmem_limit,
        ),
    )(x3, w, b)

    return out3.reshape(N, C, H, W)


if __name__ == "__main__":
    key = jax.random.PRNGKey(0)
    kx, kw, kb = jax.random.split(key, 3)

    N, C, H, W = 2, 4, 16, 16
    x = jax.random.normal(kx, (N, C, H, W), dtype=jnp.float32)

    # Deterministic synthetic Conv2d(in_ch, in_ch, kernel_size=1) parameters.
    # PyTorch weight shape is (C_out, C_in, 1, 1); we keep the squeezed (C_out, C_in).
    weight = jax.random.normal(kw, (C, C), dtype=jnp.float32) * 0.1
    bias = jax.random.normal(kb, (C,), dtype=jnp.float32) * 0.1

    out = sse_forward(x, weight, bias)
    jax.block_until_ready(out)

    # Reference check in plain JAX (same math as the PyTorch forward).
    conv = jnp.einsum("oc,nchw->nohw", weight, x) + bias[None, :, None, None]
    ref = x * jax.nn.sigmoid(conv)
    assert out.shape == (N, C, H, W)
    assert jnp.allclose(out, ref, atol=1e-5, rtol=1e-5)

    print("KERNEL_OK")
</pallas_src>

<mosaic_0001>
module attributes {stable_mosaic.version = 11 : i64} {
  func.func @sse_kernel(%arg0: i32, %arg1: i32, %arg2: memref<1x4x256xf32, #tpu.memory_space<vmem>>, %arg3: memref<4x4xf32, #tpu.memory_space<vmem>>, %arg4: memref<4x1xf32, #tpu.memory_space<vmem>>, %arg5: memref<1x4x256xf32, #tpu.memory_space<vmem>>) attributes {dimension_semantics = [#tpu.dimension_semantics<parallel>, #tpu.dimension_semantics<parallel>], iteration_bounds = array<i64: 2, 1>, scalar_prefetch = 0 : i64, scratch_operands = 0 : i64, tpu.core_type = #tpu.core_type<tc>, window_params = [{transform_indices = @transform_0, window_bounds = array<i64: 1, 4, 256>}, {pipeline_mode = #tpu.pipeline_mode<synchronous>, transform_indices = @transform_1, window_bounds = array<i64: 4, 4>}, {pipeline_mode = #tpu.pipeline_mode<synchronous>, transform_indices = @transform_2, window_bounds = array<i64: 4, 1>}, {transform_indices = @transform_3, window_bounds = array<i64: 1, 4, 256>}]} {
    %c0 = arith.constant 0 : index
    %c0_0 = arith.constant 0 : index
    %c0_1 = arith.constant 0 : index
    %0 = vector.load %arg2[%c0, %c0_0, %c0_1] : memref<1x4x256xf32, #tpu.memory_space<vmem>>, vector<1x4x256xf32>
    %1 = vector.shape_cast %0 : vector<1x4x256xf32> to vector<4x256xf32>
    %c0_2 = arith.constant 0 : index
    %c0_3 = arith.constant 0 : index
    %2 = vector.load %arg4[%c0_2, %c0_3] : memref<4x1xf32, #tpu.memory_space<vmem>>, vector<4x1xf32>
    %c0_4 = arith.constant 0 : index
    %c0_5 = arith.constant 0 : index
    %3 = vector.load %arg3[%c0_4, %c0_5] : memref<4x4xf32, #tpu.memory_space<vmem>>, vector<4x4xf32>
    %cst = arith.constant 0.000000e+00 : f32
    %4 = vector.broadcast %cst : f32 to vector<4x256xf32>
    %5 = vector.extract_strided_slice %3 {offsets = [0, 0], sizes = [4, 1], strides = [1, 1]} : vector<4x4xf32> to vector<4x1xf32>
    %6 = vector.extract_strided_slice %1 {offsets = [0, 0], sizes = [1, 256], strides = [1, 1]} : vector<4x256xf32> to vector<1x256xf32>
    %7 = vector.broadcast %5 : vector<4x1xf32> to vector<4x256xf32>
    %8 = vector.broadcast %6 : vector<1x256xf32> to vector<4x256xf32>
    %9 = arith.mulf %7, %8 : vector<4x256xf32>
    %10 = arith.addf %4, %9 : vector<4x256xf32>
    %11 = vector.extract_strided_slice %3 {offsets = [0, 1], sizes = [4, 1], strides = [1, 1]} : vector<4x4xf32> to vector<4x1xf32>
    %12 = vector.extract_strided_slice %1 {offsets = [1, 0], sizes = [1, 256], strides = [1, 1]} : vector<4x256xf32> to vector<1x256xf32>
    %13 = vector.broadcast %11 : vector<4x1xf32> to vector<4x256xf32>
    %14 = vector.broadcast %12 : vector<1x256xf32> to vector<4x256xf32>
    %15 = arith.mulf %13, %14 : vector<4x256xf32>
    %16 = arith.addf %10, %15 : vector<4x256xf32>
    %17 = vector.extract_strided_slice %3 {offsets = [0, 2], sizes = [4, 1], strides = [1, 1]} : vector<4x4xf32> to vector<4x1xf32>
    %18 = vector.extract_strided_slice %1 {offsets = [2, 0], sizes = [1, 256], strides = [1, 1]} : vector<4x256xf32> to vector<1x256xf32>
    %19 = vector.broadcast %17 : vector<4x1xf32> to vector<4x256xf32>
    %20 = vector.broadcast %18 : vector<1x256xf32> to vector<4x256xf32>
    %21 = arith.mulf %19, %20 : vector<4x256xf32>
    %22 = arith.addf %16, %21 : vector<4x256xf32>
    %23 = vector.extract_strided_slice %3 {offsets = [0, 3], sizes = [4, 1], strides = [1, 1]} : vector<4x4xf32> to vector<4x1xf32>
    %24 = vector.extract_strided_slice %1 {offsets = [3, 0], sizes = [1, 256], strides = [1, 1]} : vector<4x256xf32> to vector<1x256xf32>
    %25 = vector.broadcast %23 : vector<4x1xf32> to vector<4x256xf32>
    %26 = vector.broadcast %24 : vector<1x256xf32> to vector<4x256xf32>
    %27 = arith.mulf %25, %26 : vector<4x256xf32>
    %28 = arith.addf %22, %27 : vector<4x256xf32>
    %29 = vector.broadcast %2 : vector<4x1xf32> to vector<4x256xf32>
    %30 = arith.addf %28, %29 : vector<4x256xf32>
    %31 = arith.negf %30 : vector<4x256xf32>
    %32 = math.exp %31 : vector<4x256xf32>
    %cst_6 = arith.constant 1.000000e+00 : f32
    %33 = vector.broadcast %cst_6 : f32 to vector<4x256xf32>
    %34 = arith.addf %33, %32 : vector<4x256xf32>
    %35 = arith.divf %33, %34 : vector<4x256xf32>
    %36 = arith.mulf %1, %35 : vector<4x256xf32>
    %c0_7 = arith.constant 0 : index
    %c0_8 = arith.constant 0 : index
    %c0_9 = arith.constant 0 : index
    %37 = vector.load %arg5[%c0_7, %c0_8, %c0_9] : memref<1x4x256xf32, #tpu.memory_space<vmem>>, vector<1x4x256xf32>
    %38 = vector.shape_cast %37 : vector<1x4x256xf32> to vector<4x256xf32>
    %39 = vector.shape_cast %36 : vector<4x256xf32> to vector<1x4x256xf32>
    tpu.vector_store %arg5[%c0_7, %c0_8, %c0_9], %39 {strides = array<i32>} : memref<1x4x256xf32, #tpu.memory_space<vmem>>, vector<1x4x256xf32>,
    return
  }
  func.func @transform_0(%arg0: i32, %arg1: i32) -> (i32, i32, i32) {
    %c0_i32 = arith.constant 0 : i32
    %c0_i32_0 = arith.constant 0 : i32
    return %arg0, %c0_i32, %arg1 : i32, i32, i32
  }
  func.func @transform_1(%arg0: i32, %arg1: i32) -> (i32, i32) {
    %c0_i32 = arith.constant 0 : i32
    %c0_i32_0 = arith.constant 0 : i32
    %c0_i32_1 = arith.constant 0 : i32
    return %c0_i32, %c0_i32_0 : i32, i32
  }
  func.func @transform_2(%arg0: i32, %arg1: i32) -> (i32, i32) {
    %c0_i32 = arith.constant 0 : i32
    %c0_i32_0 = arith.constant 0 : i32
    %c0_i32_1 = arith.constant 0 : i32
    return %c0_i32, %c0_i32_0 : i32, i32
  }
  func.func @transform_3(%arg0: i32, %arg1: i32) -> (i32, i32, i32) {
    %c0_i32 = arith.constant 0 : i32
    %c0_i32_0 = arith.constant 0 : i32
    return %arg0, %c0_i32, %arg1 : i32, i32, i32
  }
}

</mosaic_0001>

<llo_original>
// kernel: tpu_custom_call.1
$region0: #{tpu_custom_call.1}
  #allocation0 [shape = 'u32[]', space=smem, size = 0x4, offset = 0x4, fixed_abs, tag = 'smem constant byte address 0x4 - core index']
  #allocation1 [shape = 'u32[144,128]{1,0:T(1,128)}', space=vmem, size = 0x12000, scoped, tag = 'internal scratch']
  %s0 = inlined_call_operand.hbm [shape: f32[2,4,256], index: 0, kind: input, shape index: {}]
  %s1 = inlined_call_operand.vmem [shape: f32[4,4], index: 1, kind: input, shape index: {}]
  %s2 = inlined_call_operand.vmem [shape: f32[4,1], index: 2, kind: input, shape index: {}]
  %s3 = inlined_call_operand.hbm [shape: f32[2,4,256], index: 3, kind: output, shape index: {}]
  %s4 = sld [smem:[#allocation0]]
  $region49: #{tpu_custom_call.1} parent=0
    _
  %s6 = ssub.s32 1, %s4
  %s7 = scalar_select 0, %s6, %s4
  $region1: #{tpu_custom_call.1} parent=0
    #allocation2 [shape = 'u8[8192]{0}', space=vmem, size = 0x2000, scoped, tag = 'input window, operand 0']
    #allocation3 [shape = 's32[2]{0}', space=sflag, size = 0x8, scoped, tag = 'scoped memory for tpu_custom_call.1']
    #allocation4 [shape = 's32[2]{0}', space=sflag, size = 0x8, scoped, tag = 'scoped memory for tpu_custom_call.1']
    #allocation5 [shape = 'u8[8192]{0}', space=vmem, size = 0x2000, scoped, tag = 'output window, operand 0']
    %8 = vsyncpa [#allocation3], 0
    %s9 = scalar_lea.sflag [#allocation3], 1
    %10 = vsyncpa %s9, 0
    %11 = vsyncpa [#allocation4], 0
    %s12 = scalar_lea.sflag [#allocation4], 1
    %13 = vsyncpa %s12, 0
    loop: start=0, step=1, limit=4
    $region2: #{tpu_custom_call.1} parent=1 // loop_pre_header
      _
    $region3: #{tpu_custom_call.1} parent=1 // loop_header
      %s15 = sphi 0, %s19
      %p16 = scmp.ge.s32.totalorder %s15, 4
      %s22 = sphi 0, %s34
      %s23 = sphi 0, %s30
      %s24 = sphi 0, %s22
      %s25 = sphi 0, %s23
      %s26 = sphi 0, %s24
      %s27 = sphi 0, %s25
      %s39 = sphi 0, %s41
      %s42 = sphi 0, %s39
      %s43 = sphi 0, %s42
      %s59 = sphi 0, %s43
      %s63 = sphi 0, %s63
      %s65 = sphi 0, %s63
      %s66 = sphi 0, %s65
      %s80 = sphi 0, %s66
      %s84 = sphi 0, %s84
      %s86 = sphi 0, %s84
      %s87 = sphi 0, %s86
      %s101 = sphi 0, %s87
      %s109 = sphi 0, %s111
      %s112 = sphi 0, %s109
      %s113 = sphi 0, %s112
      %s129 = sphi 0, %s113
    $region4: #{tpu_custom_call.1} parent=1 // loop_header_branch
      %18 = sbr.rel (%p16) target = $region8
    $region5: #{tpu_custom_call.1} parent=1 // loop_body
      %s20 = ssub.s32 %s15, 1
      %s21 = ssub.s32 %s15, 2
      %s28 = sadd.s32 1, %s23
      %p29 = scmp.ge.s32.totalorder %s28, 1
      %s30 = scalar_select %p29, 0, %s28
      %s31 = sadd.s32 1, %s22
      %s32 = scalar_select %p29, %s31, %s22
      %p33 = scmp.ge.s32.totalorder %s32, 2
      %s34 = scalar_select %p33, 0, %s32
      %s35 = ssub.s32 %s22, %s34
      %s36 = ssub.s32 %s23, %s30
      %s37 = sor.u32 %s35, %s36
      %p38 = scmp.eq.s32.totalorder %s37, 0
      %s40 = sadd.s32 %s39, 1
      %s41 = scalar_select %p38, %s39, %s40
      %p44 = pneg %p38
      %p45 = scmp.eq.s32.totalorder %s15, 1
      %p46 = por %p44, %p45
      %p47 = scmp.ne.s32.totalorder %s39, %s42
      %p48 = scmp.eq.s32.totalorder %s15, 0
      %p49 = por %p47, %p48
      %p50 = scmp.ne.s32.totalorder %s39, %s42
      %p51 = scmp.eq.s32.totalorder %s20, 1
      %p52 = por %p50, %p51
      %p53 = scmp.ne.s32.totalorder %s42, %s43
      %p54 = scmp.eq.s32.totalorder %s20, 0
      %p55 = por %p53, %p54
      %p56 = scmp.ne.s32.totalorder %s42, %s43
      %p57 = scmp.eq.s32.totalorder %s21, 1
      %p58 = por %p56, %p57
      %p60 = scmp.ne.s32.totalorder %s43, %s59
      %p61 = scmp.eq.s32.totalorder %s21, 0
      %p62 = por %p60, %p61
      %s64 = sadd.s32 %s63, 1
      %p67 = scmp.eq.s32.totalorder %s15, 1
      %p68 = scmp.ne.s32.totalorder %s63, %s65
      %p69 = scmp.eq.s32.totalorder %s15, 0
      %p70 = por %p68, %p69
      %p71 = scmp.ne.s32.totalorder %s63, %s65
      %p72 = scmp.eq.s32.totalorder %s20, 1
      %p73 = por %p71, %p72
      %p74 = scmp.ne.s32.totalorder %s65, %s66
      %p75 = scmp.eq.s32.totalorder %s20, 0
      %p76 = por %p74, %p75
      %p77 = scmp.ne.s32.totalorder %s65, %s66
      %p78 = scmp.eq.s32.totalorder %s21, 1
      %p79 = por %p77, %p78
      %p81 = scmp.ne.s32.totalorder %s66, %s80
      %p82 = scmp.eq.s32.totalorder %s21, 0
      %p83 = por %p81, %p82
      %s85 = sadd.s32 %s84, 1
      %p88 = scmp.eq.s32.totalorder %s15, 1
      %p89 = scmp.ne.s32.totalorder %s84, %s86
      %p90 = scmp.eq.s32.totalorder %s15, 0
      %p91 = por %p89, %p90
      %p92 = scmp.ne.s32.totalorder %s84, %s86
      %p93 = scmp.eq.s32.totalorder %s20, 1
      %p94 = por %p92, %p93
      %p95 = scmp.ne.s32.totalorder %s86, %s87
      %p96 = scmp.eq.s32.totalorder %s20, 0
      %p97 = por %p95, %p96
      %p98 = scmp.ne.s32.totalorder %s86, %s87
      %p99 = scmp.eq.s32.totalorder %s21, 1
      %p100 = por %p98, %p99
      %p102 = scmp.ne.s32.totalorder %s87, %s101
      %p103 = scmp.eq.s32.totalorder %s21, 0
      %p104 = por %p102, %p103
      %s105 = ssub.s32 %s22, %s34
      %s106 = ssub.s32 %s23, %s30
      %s107 = sor.u32 %s105, %s106
      %p108 = scmp.eq.s32.totalorder %s107, 0
      %s110 = sadd.s32 %s109, 1
      %s111 = scalar_select %p108, %s109, %s110
      %p114 = pneg %p108
      %p115 = scmp.eq.s32.totalorder %s15, 1
      %p116 = por %p114, %p115
      %p117 = scmp.ne.s32.totalorder %s109, %s112
      %p118 = scmp.eq.s32.totalorder %s15, 0
      %p119 = por %p117, %p118
      %p120 = scmp.ne.s32.totalorder %s109, %s112
      %p121 = scmp.eq.s32.totalorder %s20, 1
      %p122 = por %p120, %p121
      %p123 = scmp.ne.s32.totalorder %s112, %s113
      %p124 = scmp.eq.s32.totalorder %s20, 0
      %p125 = por %p123, %p124
      %p126 = scmp.ne.s32.totalorder %s112, %s113
      %p127 = scmp.eq.s32.totalorder %s21, 1
      %p128 = por %p126, %p127
      %p130 = scmp.ne.s32.totalorder %s113, %s129
      %p131 = scmp.eq.s32.totalorder %s21, 0
      %p132 = por %p130, %p131
      %p133 = scmp.le.s32.totalorder 1, %s15
      %p134 = scmp.lt.s32.totalorder %s15, 3
      %p135 = pnand %p133, %p134
      %p136 = pneg %p135
      // Predicated region
      $region9: #{tpu_custom_call.1} parent=5 // pred_check
        _
      $region10: #{tpu_custom_call.1} parent=5 // pred_check_branch
        %138 = sbr.rel (%p135) target = $region12
      $region11: #{tpu_custom_call.1} parent=5 // pred_region
        %s139 = ssub.s32 %s15, 1
        // Predicated region
        $region13: #{tpu_custom_call.1} parent=11 // pred_check
          %p140 = pneg %p76
        $region14: #{tpu_custom_call.1} parent=11 // pred_check_branch
          %142 = sbr.rel (%p140) target = $region16
        $region15: #{tpu_custom_call.1} parent=11 // pred_region
          _
        $region16: #{tpu_custom_call.1} parent=11 // pred_fallthru
          _
        // Predicated region
        $region17: #{tpu_custom_call.1} parent=11 // pred_check
          %p143 = pneg %p97
        $region18: #{tpu_custom_call.1} parent=11 // pred_check_branch
          %145 = sbr.rel (%p143) target = $region20
        $region19: #{tpu_custom_call.1} parent=11 // pred_region
          _
        $region20: #{tpu_custom_call.1} parent=11 // pred_fallthru
          _
      $region12: #{tpu_custom_call.1} parent=5 // pred_fallthru
        _
      %p146 = scmp.lt.s32.totalorder %s15, 2
      // Predicated region
      $region21: #{tpu_custom_call.1} parent=5 // pred_check
        %p147 = pneg %p146
      $region22: #{tpu_custom_call.1} parent=5 // pred_check_branch
        %149 = sbr.rel (%p147) target = $region24
      $region23: #{tpu_custom_call.1} parent=5 // pred_region
        // Predicated region
        $region25: #{tpu_custom_call.1} parent=23 // pred_check
          %p150 = pneg %p49
        $region26: #{tpu_custom_call.1} parent=23 // pred_check_branch
          %152 = sbr.rel (%p150) target = $region28
        $region27: #{tpu_custom_call.1} parent=23 // pred_region
          %s153 = sand.u32 %s39, 1
          %s154 = scalar_lea.sflag [#allocation3], %s153
          %s155 = sand.u32 %s39, 1
          %s156 = smul.addr %s155, 8
          %s157 = scalar_lea.vmem [#allocation2], %s156
          %s158 = smul.u32 2, %s23
          %s160 = ssub.s32 128, 128
          %161 = vsyncadd %s154, %s160
          %s162 = smul.addr %s22, 2
          %s163 = sadd.s32 %s158, %s162
          %s164 = smul.addr %s163, 64
          %s165 = scalar_lea.hbm %s0, %s164
          %s167 = sshll.u32 %s157, 4
          %s168 = int_to_ptr.vmem [resolvable:$true] %s167
          %170 = dma.hbm_to_vmem [thread:$0]  %s165, 128, %s168, %s154
        $region28: #{tpu_custom_call.1} parent=23 // pred_fallthru
          _
      $region24: #{tpu_custom_call.1} parent=5 // pred_fallthru
        _
      %p171 = scmp.le.s32.totalorder 1, %s15
      %p172 = scmp.lt.s32.totalorder %s15, 3
      %p173 = pnand %p171, %p172
      %p174 = pneg %p173
      // Predicated region
      $region29: #{tpu_custom_call.1} parent=5 // pred_check
        _
      $region30: #{tpu_custom_call.1} parent=5 // pred_check_branch
        %176 = sbr.rel (%p173) target = $region32
      $region31: #{tpu_custom_call.1} parent=5 // pred_region
        %s177 = ssub.s32 %s15, 1
        %s178 = sand.u32 %s42, 1
        %s179 = scalar_lea.sflag [#allocation3], %s178
        %s180 = sand.u32 %s42, 1
        %s181 = smul.addr %s180, 8
        %s182 = scalar_lea.vmem [#allocation2], %s181
        // Predicated region
        $region33: #{tpu_custom_call.1} parent=31 // pred_check
          %p183 = pneg %p55
        $region34: #{tpu_custom_call.1} parent=31 // pred_check_branch
          %185 = sbr.rel (%p183) target = $region36
        $region35: #{tpu_custom_call.1} parent=31 // pred_region
          %186 = dma.done %s179, 128
        $region36: #{tpu_custom_call.1} parent=31 // pred_fallthru
          _
        %s187 = sand.u32 %s42, 1
        %s188 = scalar_lea.sflag [#allocation3], %s187
        %s189 = sand.u32 %s42, 1
        %s190 = smul.addr %s189, 8
        %s191 = scalar_lea.vmem [#allocation2], %s190
        %p192 = pneg %p55
        %p193 = pneg %p52
        %p194 = pneg %p76
        %p195 = pneg %p73
        %p196 = pneg %p97
        %p197 = pneg %p94
        %p198 = pneg %p125
        %p199 = pneg %p122
        %s200 = sand.u32 %s112, 1
        %s201 = scalar_lea.sflag [#allocation4], %s200
        %s202 = sand.u32 %s112, 1
        %s203 = smul.addr %s202, 8
        %s204 = scalar_lea.vmem [#allocation5], %s203
        %s205 = smul.u32 2, %s25
        %s206 = smul.u32 2, %s25
        %v207 = vld [vmem:[%s182] sm:$0xff]
        %v208 = vld [vmem:[%s2] sm:$0xf]
        %v209 = vld [vmem:[%s1] sm:$0xf]
        %211 = vset.pattern.permute.xlu0 0
        %212 = vperm.xlu0 %211, %v209
        %v213 = vpop.permute.xlu0 %212
        %v216 = vlaneseq
        %v217 = vshrl.u32 %v216, 7
        %v218 = vsub.s32 0, %v217
        %v219 = vrot.slane %v207, %v218
        %v220 = vlaneseq
        %v221 = vshrl.u32 %v220, 7
        %v222 = vsub.s32 4, %v221
        %v223 = vrot.slane %v207, %v222
        %v226 = vlaneseq
        %v227 = vshrl.u32 %v226, 7
        %v228 = vsub.s32 0, %v227
        %v229 = vrot.slane %v219, %v228
        %v230 = vlaneseq
        %v231 = vshrl.u32 %v230, 7
        %v232 = vsub.s32 0, %v231
        %v233 = vrot.slane %v223, %v232
        %v234 = vmul.f32 %v213, %v229
        %v235 = vmul.f32 %v213, %v233
        %v236 = vadd.f32 %v234, 0.0
        %v237 = vadd.f32 %v235, 0.0
        %238 = vset.pattern.permute.xlu0 1
        %239 = vperm.xlu0 %238, %v209
        %v240 = vpop.permute.xlu0 %239
        %v242 = vlaneseq
        %v243 = vshrl.u32 %v242, 7
        %v244 = vsub.s32 1, %v243
        %v245 = vrot.slane %v207, %v244
        %v246 = vlaneseq
        %v247 = vshrl.u32 %v246, 7
        %v248 = vsub.s32 5, %v247
        %v249 = vrot.slane %v207, %v248
        %v252 = vlaneseq
        %v253 = vshrl.u32 %v252, 7
        %v254 = vsub.s32 1, %v253
        %v255 = vrot.slane %v245, %v254
        %v256 = vlaneseq
        %v257 = vshrl.u32 %v256, 7
        %v258 = vsub.s32 1, %v257
        %v259 = vrot.slane %v249, %v258
        %v260 = vmul.f32 %v240, %v255
        %v261 = vmul.f32 %v240, %v259
        %v262 = vadd.f32 %v236, %v260
        %v263 = vadd.f32 %v237, %v261
        %264 = vset.pattern.permute.xlu0 2
        %265 = vperm.xlu0 %264, %v209
        %v266 = vpop.permute.xlu0 %265
        %v268 = vlaneseq
        %v269 = vshrl.u32 %v268, 7
        %v270 = vsub.s32 2, %v269
        %v271 = vrot.slane %v207, %v270
        %v272 = vlaneseq
        %v273 = vshrl.u32 %v272, 7
        %v274 = vsub.s32 6, %v273
        %v275 = vrot.slane %v207, %v274
        %v278 = vlaneseq
        %v279 = vshrl.u32 %v278, 7
        %v280 = vsub.s32 2, %v279
        %v281 = vrot.slane %v271, %v280
        %v282 = vlaneseq
        %v283 = vshrl.u32 %v282, 7
        %v284 = vsub.s32 2, %v283
        %v285 = vrot.slane %v275, %v284
        %v286 = vmul.f32 %v266, %v281
        %v287 = vmul.f32 %v266, %v285
        %v288 = vadd.f32 %v262, %v286
        %v289 = vadd.f32 %v263, %v287
        %290 = vset.pattern.permute.xlu0 3
        %291 = vperm.xlu0 %290, %v209
        %v292 = vpop.permute.xlu0 %291
        %v294 = vlaneseq
        %v295 = vshrl.u32 %v294, 7
        %v296 = vsub.s32 3, %v295
        %v297 = vrot.slane %v207, %v296
        %v298 = vlaneseq
        %v299 = vshrl.u32 %v298, 7
        %v300 = vsub.s32 7, %v299
        %v301 = vrot.slane %v207, %v300
        %v304 = vlaneseq
        %v305 = vshrl.u32 %v304, 7
        %v306 = vsub.s32 3, %v305
        %v307 = vrot.slane %v297, %v306
        %v308 = vlaneseq
        %v309 = vshrl.u32 %v308, 7
        %v310 = vsub.s32 3, %v309
        %v311 = vrot.slane %v301, %v310
        %v312 = vmul.f32 %v292, %v307
        %v313 = vmul.f32 %v292, %v311
        %v314 = vadd.f32 %v288, %v312
        %v315 = vadd.f32 %v289, %v313
        %317 = vset.pattern.permute.xlu0 0
        %318 = vperm.xlu0 %317, %v208
        %v319 = vpop.permute.xlu0 %318
        %v321 = vadd.f32 %v314, %v319
        %v322 = vadd.f32 %v315, %v319
        %v323 = vxor.u32 %v321, 2147483648
        %v324 = vxor.u32 %v322, 2147483648
        %v325 = vmul.f32 %v323, 1.442695
        %v326 = vpow.pop %v325
        %v327 = vmul.f32 %v324, 1.442695
        %v328 = vpow.pop %v327
        %v329 = vadd.f32 %v326, 1.0
        %v330 = vadd.f32 %v328, 1.0
        %v331 = vrcp.pop %v329
        %v332 = vmul.f32 1.0, %v331
        %v333 = vrcp.pop %v330
        %v334 = vmul.f32 1.0, %v333
        %v337 = vcombine.low %v332, %v334
        %v339 = vmul.f32 %v207, %v337
        %340 = vst [vmem:[%s204] sm:$0xff] %v339
        %s341 = sand.u32 %s112, 1
        %s342 = scalar_lea.sflag [#allocation4], %s341
        %s343 = sand.u32 %s112, 1
        %s344 = smul.addr %s343, 8
        %s345 = scalar_lea.vmem [#allocation5], %s344
        // Predicated region
        $region37: #{tpu_custom_call.1} parent=31 // pred_check
          %p346 = pneg %p122
        $region38: #{tpu_custom_call.1} parent=31 // pred_check_branch
          %348 = sbr.rel (%p346) target = $region40
        $region39: #{tpu_custom_call.1} parent=31 // pred_region
          %s349 = smul.u32 2, %s25
          %s351 = ssub.s32 128, 128
          %352 = vsyncadd %s342, %s351
          %s353 = smul.addr %s24, 2
          %s354 = sadd.s32 %s349, %s353
          %s355 = smul.addr %s354, 64
          %s356 = scalar_lea.hbm %s3, %s355
          %s358 = sshll.u32 %s345, 4
          %s359 = int_to_ptr.vmem [resolvable:$true] %s358
          %361 = dma.vmem_to_hbm [thread:$0]  %s359, 128, %s356, %s342
        $region40: #{tpu_custom_call.1} parent=31 // pred_fallthru
          _
      $region32: #{tpu_custom_call.1} parent=5 // pred_fallthru
        _
      %p362 = scmp.le.s32.totalorder 2, %s15
      // Predicated region
      $region41: #{tpu_custom_call.1} parent=5 // pred_check
        %p363 = pneg %p362
      $region42: #{tpu_custom_call.1} parent=5 // pred_check_branch
        %365 = sbr.rel (%p363) target = $region44
      $region43: #{tpu_custom_call.1} parent=5 // pred_region
        %s366 = ssub.s32 %s15, 2
        // Predicated region
        $region45: #{tpu_custom_call.1} parent=43 // pred_check
          %p367 = pneg %p128
        $region46: #{tpu_custom_call.1} parent=43 // pred_check_branch
          %369 = sbr.rel (%p367) target = $region48
        $region47: #{tpu_custom_call.1} parent=43 // pred_region
          %s370 = sand.u32 %s113, 1
          %s371 = scalar_lea.sflag [#allocation4], %s370
          %s372 = sand.u32 %s113, 1
          %s373 = smul.addr %s372, 8
          %s374 = scalar_lea.vmem [#allocation5], %s373
          %375 = dma.done %s371, 128
        $region48: #{tpu_custom_call.1} parent=43 // pred_fallthru
          _
      $region44: #{tpu_custom_call.1} parent=5 // pred_fallthru
        _
    $region6: #{tpu_custom_call.1} parent=1 // loop_footer
      %s19 = sadd.s32 1, %s15
    $region7: #{tpu_custom_call.1} parent=1 // loop_footer_branch
      %14 = sbr.rel target = $region3
    $region8: #{tpu_custom_call.1} parent=1 // loop_exit
      _
    %376 = vsyncpa [#allocation3], 1
    %s377 = scalar_lea.sflag [#allocation3], 1
    %378 = vsyncpa %s377, 1
    %379 = vsyncpa [#allocation4], 1
    %s380 = scalar_lea.sflag [#allocation4], 1
    %381 = vsyncpa %s380, 1

</llo_original>
